<compile_context>
chip_gen: v5e
topology: v5e:2x2
jax: 0.10.0
libtpu: 0.0.40
codegen_flags: <defaults>
</compile_context>

<pallas_src>
import functools

import jax
import jax.numpy as jnp
from jax.experimental import pallas as pl
from jax.experimental.pallas import tpu as pltpu


def _vq_kernel(x_ref, wt_ref, w_ref, w2h_ref, q_ref, sse_ref, *,
               n_rows, tile_n, mask_rows):
    x = x_ref[...]                                   # (TN, D) f32 tile
    wt = wt_ref[...]                                 # (D, K)  resident, pre-transposed
    w = w_ref[...]                                   # (K, D)  resident f32 codebook
    w2h = w2h_ref[...]                               # (1, K)  hoisted 0.5*||w||^2
    tn, d = x.shape
    k = w.shape[0]

    # Argmin score: 0.5*||w||^2 - x.W  (||x||^2 and the factor 2 dropped --
    # argmin unchanged).  Score matmul uses the MXU-native dtype of wt (bf16
    # by default); only the tiny (TN, D) x cast happens per step.
    xw = jnp.dot(x.astype(wt.dtype), wt,
                 preferred_element_type=jnp.float32)             # (TN, K) MXU
    score = w2h - xw                                             # (TN, K)

    # argmin along the codebook axis (first index on ties, matching torch.argmin).
    min_s = jnp.min(score, axis=1, keepdims=True)                # (TN, 1)
    iota_k = jax.lax.broadcasted_iota(jnp.int32, (tn, k), 1)     # (TN, K)
    cand = jnp.where(score == min_s, iota_k, jnp.int32(k))
    idx = jnp.min(cand, axis=1)                                  # (TN,)

    # One-hot @ codebook (same computation PyTorch does via scatter+matmul).
    # Kept in f32 so quantized rows reproduce codebook entries exactly.
    onehot = (iota_k == idx[:, None]).astype(jnp.float32)        # (TN, K)
    quantized = jnp.dot(onehot, w,
                        preferred_element_type=jnp.float32)      # (TN, D)

    diff = quantized - x
    sq = diff * diff
    if mask_rows:
        # Padded rows (global row index >= n_rows) must not contribute to SSE.
        row = (pl.program_id(0) * tile_n
               + jax.lax.broadcasted_iota(jnp.int32, (tn, d), 0))
        sq = jnp.where(row < n_rows, sq, 0.0)

    # Per-step partial SSE: only a cross-sublane reduce here; the scalar
    # reduction happens in the JAX epilogue.  No carried accumulator, so the
    # grid axis is 'parallel' (megacore-safe on v7x).
    sse_ref[...] = jnp.sum(sq, axis=0, keepdims=True)[None]      # (1, 1, D)

    # Straight-through estimator forward value: (quantized - x).detach() + x.
    q_ref[...] = (diff + x).astype(q_ref.dtype)


def _round_up(v, m):
    return ((v + m - 1) // m) * m


def _vmem_capacity_bytes():
    """Physical VMEM of the attached TPU generation; conservative fallback."""
    try:
        info = pltpu.get_tpu_info()
        cap = getattr(info, "vmem_capacity_bytes", None)
        if cap:
            return int(cap)
    except Exception:
        pass
    return 64 * 1024 * 1024  # v7x-sized fallback (most restrictive)


def _choose_tile_n(n, d, k, tile_n_max, vmem_budget_bytes, min_steps=1):
    """Largest 8-aligned tile <= tile_n_max whose per-step VMEM footprint fits
    the (per-generation) budget.  N is later padded up to a tile multiple."""
    def footprint(tn):
        return (4 * 4 * tn * d                       # x in + quantized out, double-buffered f32
                + 2 * (2 * d * k + 4 * k * d + 4 * k)  # resident bf16 W^T, f32 W, 0.5||w||^2
                + 8 * 4 * tn * k                     # (TN, K) f32 temporaries
                + 2 * 4 * d)                         # SSE partial
    n8 = _round_up(n, 8)
    tn = min(_round_up(tile_n_max, 8), n8)
    if min_steps > 1:                                # keep >=2 grid steps for v7x megacore
        tn = min(tn, _round_up(-(-n8 // min_steps), 8))
    tn = max(tn, 8)
    while tn > 8 and footprint(tn) > vmem_budget_bytes:
        tn -= 8
    return tn


@functools.partial(jax.jit, static_argnames=("beta", "tile_n_max", "use_bf16_matmul"))
def quantization_layer_forward(x, codebook, *, beta, tile_n_max=4096,
                               use_bf16_matmul=True):
    """x: (N, D) float32, codebook: (K, D) float32. Returns (quantized_st, vq_loss)."""
    n, d = x.shape
    k, _ = codebook.shape

    # Per-generation VMEM sizing: ~42 MiB footprint budget on v5e/v6e (128 MiB
    # physical), ~21 MiB on v7x (64 MiB physical).
    vmem_cap = _vmem_capacity_bytes()
    budget = min(vmem_cap // 3, 48 * 1024 * 1024)
    vmem_limit = int(min(vmem_cap // 2, 64 * 1024 * 1024))

    min_steps = 2 if n >= 4096 else 1                # give v7x's 2nd core work at large N
    tile_n = _choose_tile_n(n, d, k, tile_n_max, budget, min_steps)
    grid_n = pl.cdiv(n, tile_n)
    n_pad = grid_n * tile_n
    mask_rows = n_pad != n
    x_in = jnp.pad(x, ((0, n_pad - n), (0, 0))) if mask_rows else x

    # One-time hoisted codebook prep (outside the grid loop).
    w_f32 = codebook.astype(jnp.float32)
    score_dtype = jnp.bfloat16 if use_bf16_matmul else jnp.float32
    w_t = w_f32.T.astype(score_dtype)                            # (D, K)
    w2_half = 0.5 * jnp.sum(w_f32 ** 2, axis=1)[None, :]         # (1, K)

    kernel = functools.partial(_vq_kernel, n_rows=n, tile_n=tile_n,
                               mask_rows=mask_rows)

    quantized, sse_partials = pl.pallas_call(
        kernel,
        out_shape=(
            jax.ShapeDtypeStruct((n_pad, d), jnp.float32),
            jax.ShapeDtypeStruct((grid_n, 1, d), jnp.float32),
        ),
        grid_spec=pltpu.PrefetchScalarGridSpec(
            num_scalar_prefetch=0,
            grid=(grid_n,),
            in_specs=[
                pl.BlockSpec((tile_n, d), lambda i: (i, 0)),     # x tile
                pl.BlockSpec((d, k), lambda i: (0, 0)),          # resident W^T (bf16)
                pl.BlockSpec((k, d), lambda i: (0, 0)),          # resident W (f32)
                pl.BlockSpec((1, k), lambda i: (0, 0)),          # hoisted 0.5*||w||^2
            ],
            out_specs=[
                pl.BlockSpec((tile_n, d), lambda i: (i, 0)),     # quantized tile
                pl.BlockSpec((1, 1, d), lambda i: (i, 0, 0)),    # per-step SSE partial
            ],
        ),
        compiler_params=pltpu.CompilerParams(
            dimension_semantics=("parallel",),                   # no carried state
            vmem_limit_bytes=vmem_limit,
        ),
    )(x_in, w_t, w_f32, w2_half)

    if mask_rows:
        quantized = quantized[:n]

    # Scalar epilogue in JAX (forward values of both MSE losses are identical).
    mse = jnp.sum(sse_partials) / jnp.float32(n * d)
    commitment_loss = mse   # F.mse_loss(quantized.detach(), x)
    embedding_loss = mse    # F.mse_loss(quantized, x.detach())
    vq_loss = commitment_loss * jnp.float32(beta) + embedding_loss
    return quantized, vq_loss


def xavier_uniform(key, shape):
    fan_out, fan_in = shape  # nn.Embedding weight treated as a (K, D) matrix
    bound = jnp.sqrt(6.0 / (fan_in + fan_out))
    return jax.random.uniform(key, shape, jnp.float32, -bound, bound)


if __name__ == "__main__":
    # Module hyper-parameters (synthetic, deterministic).
    params = {"nout": 32, "num_embeddings": 128, "beta": 0.25}
    D = params["nout"]
    K = params["num_embeddings"]
    BETA = params["beta"]
    N = 128  # number of flattened latent vectors (e.g. batch * spatial positions)

    key = jax.random.PRNGKey(0)
    k_x, k_w = jax.random.split(key)
    x = jax.random.normal(k_x, (N, D), jnp.float32)
    codebook = xavier_uniform(k_w, (K, D))

    quantized_st, vq_loss = quantization_layer_forward(x, codebook, beta=BETA)
    jax.block_until_ready((quantized_st, vq_loss))

    # Sanity check against a pure-JAX reference (full torch distance formula).
    # The bf16 score matmul may flip argmin only on near-ties, so the check is
    # tolerance-based (each chosen entry is a (near-)nearest codebook row and
    # the loss matches), not bit-exact.
    dist_ref = (jnp.sum(x ** 2, axis=1, keepdims=True)
                + jnp.sum(codebook ** 2, axis=1)
                - 2.0 * x @ codebook.T)
    idx_ref = jnp.argmin(dist_ref, axis=1)
    q_ref = codebook[idx_ref]
    mse_ref = jnp.mean((q_ref - x) ** 2)
    vq_ref = mse_ref * BETA + mse_ref

    d_chosen = jnp.sum((quantized_st - x) ** 2, axis=1)   # distance of kernel's pick
    d_best = jnp.min(dist_ref, axis=1)
    assert bool(jnp.all(d_chosen <= d_best + 5e-2)), "kernel picked a non-nearest codebook row"
    mse_kernel = jnp.mean((quantized_st - x) ** 2)
    assert jnp.allclose(vq_loss, mse_kernel * (1.0 + BETA), atol=1e-5)
    assert jnp.allclose(vq_loss, vq_ref, rtol=5e-2, atol=1e-4)

    print("KERNEL_OK")
</pallas_src>

<mosaic_0001>
module attributes {stable_mosaic.version = 11 : i64} {
  func.func @_vq_kernel(%arg0: i32, %arg1: memref<128x32xf32, #tpu.memory_space<vmem>>, %arg2: memref<32x128xbf16, #tpu.memory_space<vmem>>, %arg3: memref<128x32xf32, #tpu.memory_space<vmem>>, %arg4: memref<1x128xf32, #tpu.memory_space<vmem>>, %arg5: memref<128x32xf32, #tpu.memory_space<vmem>>, %arg6: memref<1x1x32xf32, #tpu.memory_space<vmem>>) attributes {dimension_semantics = [#tpu.dimension_semantics<parallel>], iteration_bounds = array<i64: 1>, scalar_prefetch = 0 : i64, scratch_operands = 0 : i64, tpu.core_type = #tpu.core_type<tc>, window_params = [{transform_indices = @transform_0, window_bounds = array<i64: 128, 32>}, {pipeline_mode = #tpu.pipeline_mode<synchronous>, transform_indices = @transform_1, window_bounds = array<i64: 32, 128>}, {pipeline_mode = #tpu.pipeline_mode<synchronous>, transform_indices = @transform_2, window_bounds = array<i64: 128, 32>}, {pipeline_mode = #tpu.pipeline_mode<synchronous>, transform_indices = @transform_3, window_bounds = array<i64: 1, 128>}, {transform_indices = @transform_4, window_bounds = array<i64: 128, 32>}, {transform_indices = @transform_5, window_bounds = array<i64: 1, 1, 32>}]} {
    %c0 = arith.constant 0 : index
    %c0_0 = arith.constant 0 : index
    %0 = vector.load %arg1[%c0, %c0_0] : memref<128x32xf32, #tpu.memory_space<vmem>>, vector<128x32xf32>
    %c0_1 = arith.constant 0 : index
    %c0_2 = arith.constant 0 : index
    %1 = vector.load %arg2[%c0_1, %c0_2] : memref<32x128xbf16, #tpu.memory_space<vmem>>, vector<32x128xbf16>
    %c0_3 = arith.constant 0 : index
    %c0_4 = arith.constant 0 : index
    %2 = vector.load %arg3[%c0_3, %c0_4] : memref<128x32xf32, #tpu.memory_space<vmem>>, vector<128x32xf32>
    %c0_5 = arith.constant 0 : index
    %c0_6 = arith.constant 0 : index
    %3 = vector.load %arg4[%c0_5, %c0_6] : memref<1x128xf32, #tpu.memory_space<vmem>>, vector<1x128xf32>
    %4 = arith.truncf %0 : vector<128x32xf32> to vector<128x32xbf16>
    %cst = arith.constant dense<0.000000e+00> : vector<128x128xf32>
    %5 = tpu.matmul %4, %1, %cst {dimension_numbers = #tpu.dot_dimension_numbers<[1], [0], [0], [1], [0, 0, 1, 1], [], []>} : vector<128x32xbf16>, vector<32x128xbf16>, vector<128x128xf32> -> vector<128x128xf32>
    %6 = vector.broadcast %3 : vector<1x128xf32> to vector<128x128xf32>
    %7 = arith.subf %6, %5 : vector<128x128xf32>
    %cst_7 = arith.constant dense<0x7F800000> : vector<128xf32>
    %8 = vector.multi_reduction <minimumf>, %7, %cst_7 [1] : vector<128x128xf32> to vector<128xf32>
    %9 = vector.shape_cast %8 : vector<128xf32> to vector<128x1xf32>
    %10 = tpu.iota {dimensions = array<i32: 1>} : vector<128x128xi32>
    %11 = vector.broadcast %9 : vector<128x1xf32> to vector<128x128xf32>
    %12 = arith.cmpf oeq, %7, %11 : vector<128x128xf32>
    %c128_i32 = arith.constant 128 : i32
    %13 = vector.broadcast %c128_i32 : i32 to vector<128x128xi32>
    %14 = arith.select %12, %10, %13 : vector<128x128xi1>, vector<128x128xi32>
    %cst_8 = arith.constant dense<2147483647> : vector<128xi32>
    %15 = vector.multi_reduction <minsi>, %14, %cst_8 [1] : vector<128x128xi32> to vector<128xi32>
    %16 = vector.shape_cast %15 : vector<128xi32> to vector<128x1xi32>
    %17 = vector.broadcast %16 : vector<128x1xi32> to vector<128x128xi32>
    %18 = arith.cmpi eq, %10, %17 : vector<128x128xi32>
    %19 = arith.extui %18 : vector<128x128xi1> to vector<128x128xi32>
    %20 = arith.sitofp %19 : vector<128x128xi32> to vector<128x128xf32>
    %cst_9 = arith.constant dense<0.000000e+00> : vector<128x32xf32>
    %21 = tpu.matmul %20, %2, %cst_9 {dimension_numbers = #tpu.dot_dimension_numbers<[1], [0], [0], [1], [0, 0, 1, 1], [], []>} : vector<128x128xf32>, vector<128x32xf32>, vector<128x32xf32> -> vector<128x32xf32>
    %22 = arith.subf %21, %0 : vector<128x32xf32>
    %23 = arith.mulf %22, %22 : vector<128x32xf32>
    %cst_10 = arith.constant dense<0.000000e+00> : vector<32xf32>
    %24 = vector.multi_reduction <add>, %23, %cst_10 [0] : vector<128x32xf32> to vector<32xf32>
    %25 = vector.shape_cast %24 : vector<32xf32> to vector<1x32xf32>
    %26 = vector.shape_cast %25 : vector<1x32xf32> to vector<1x1x32xf32>
    %c0_11 = arith.constant 0 : index
    %c0_12 = arith.constant 0 : index
    %c0_13 = arith.constant 0 : index
    %27 = vector.load %arg6[%c0_11, %c0_12, %c0_13] : memref<1x1x32xf32, #tpu.memory_space<vmem>>, vector<1x1x32xf32>
    tpu.vector_store %arg6[%c0_11, %c0_12, %c0_13], %26 {strides = array<i32>} : memref<1x1x32xf32, #tpu.memory_space<vmem>>, vector<1x1x32xf32>,
    %28 = arith.addf %22, %0 : vector<128x32xf32>
    %c0_14 = arith.constant 0 : index
    %c0_15 = arith.constant 0 : index
    %29 = vector.load %arg5[%c0_14, %c0_15] : memref<128x32xf32, #tpu.memory_space<vmem>>, vector<128x32xf32>
    tpu.vector_store %arg5[%c0_14, %c0_15], %28 {strides = array<i32>} : memref<128x32xf32, #tpu.memory_space<vmem>>, vector<128x32xf32>,
    return
  }
  func.func @transform_0(%arg0: i32) -> (i32, i32) {
    %c0_i32 = arith.constant 0 : i32
    %c0_i32_0 = arith.constant 0 : i32
    return %arg0, %c0_i32 : i32, i32
  }
  func.func @transform_1(%arg0: i32) -> (i32, i32) {
    %c0_i32 = arith.constant 0 : i32
    %c0_i32_0 = arith.constant 0 : i32
    %c0_i32_1 = arith.constant 0 : i32
    return %c0_i32, %c0_i32_0 : i32, i32
  }
  func.func @transform_2(%arg0: i32) -> (i32, i32) {
    %c0_i32 = arith.constant 0 : i32
    %c0_i32_0 = arith.constant 0 : i32
    %c0_i32_1 = arith.constant 0 : i32
    return %c0_i32, %c0_i32_0 : i32, i32
  }
  func.func @transform_3(%arg0: i32) -> (i32, i32) {
    %c0_i32 = arith.constant 0 : i32
    %c0_i32_0 = arith.constant 0 : i32
    %c0_i32_1 = arith.constant 0 : i32
    return %c0_i32, %c0_i32_0 : i32, i32
  }
  func.func @transform_4(%arg0: i32) -> (i32, i32) {
    %c0_i32 = arith.constant 0 : i32
    %c0_i32_0 = arith.constant 0 : i32
    return %arg0, %c0_i32 : i32, i32
  }
  func.func @transform_5(%arg0: i32) -> (i32, i32, i32) {
    %c0_i32 = arith.constant 0 : i32
    %c0_i32_0 = arith.constant 0 : i32
    %c0_i32_1 = arith.constant 0 : i32
    return %arg0, %c0_i32, %c0_i32_0 : i32, i32, i32
  }
}

</mosaic_0001>

<llo_original>
// kernel: quantization_layer_forward.1
$region0: #{quantization_layer_forward.1}
  #allocation0 [shape = 'u32[]', space=smem, size = 0x4, offset = 0x4, fixed_abs, tag = 'smem constant byte address 0x4 - core index']
  #allocation1 [shape = 'u32[72,128]{1,0:T(1,128)}', space=vmem, size = 0x9000, scoped, tag = 'internal scratch']
  %s0 = inlined_call_operand.vmem [shape: f32[128,32], index: 0, kind: input, shape index: {}]
  %s1 = inlined_call_operand.vmem [shape: bf16[32,128], index: 1, kind: input, shape index: {}]
  %s2 = inlined_call_operand.vmem [shape: f32[128,32], index: 2, kind: input, shape index: {}]
  %s3 = inlined_call_operand.vmem [shape: f32[1,128], index: 3, kind: input, shape index: {}]
  %s4 = inlined_call_operand.vmem [shape: f32[128,32], index: 4, kind: output, shape index: {0}]
  %s5 = inlined_call_operand.vmem [shape: f32[1,1,32], index: 5, kind: output, shape index: {1}]
  %6 = xla_tuple %s4, %s5
  %s7 = sld [smem:[#allocation0]]
  $region34: #{quantization_layer_forward.1} parent=0
    _
  %s9 = ssub.s32 1, %s7
  %s10 = scalar_select 0, %s9, %s7
  // Predicated region
  $region2: #{quantization_layer_forward.1} parent=0 // pred_check
    _
  $region3: #{quantization_layer_forward.1} parent=0 // pred_check_branch
    %12 = sbr.rel (0) target = $region5
  $region4: #{quantization_layer_forward.1} parent=0 // pred_region
    _
  $region5: #{quantization_layer_forward.1} parent=0 // pred_fallthru
    _
  // Predicated region
  $region6: #{quantization_layer_forward.1} parent=0 // pred_check
    _
  $region7: #{quantization_layer_forward.1} parent=0 // pred_check_branch
    %14 = sbr.rel (0) target = $region9
  $region8: #{quantization_layer_forward.1} parent=0 // pred_region
    _
  $region9: #{quantization_layer_forward.1} parent=0 // pred_fallthru
    _
  // Predicated region
  $region10: #{quantization_layer_forward.1} parent=0 // pred_check
    _
  $region11: #{quantization_layer_forward.1} parent=0 // pred_check_branch
    %16 = sbr.rel (0) target = $region13
  $region12: #{quantization_layer_forward.1} parent=0 // pred_region
    _
  $region13: #{quantization_layer_forward.1} parent=0 // pred_fallthru
    _
  // Predicated region
  $region14: #{quantization_layer_forward.1} parent=0 // pred_check
    _
  $region15: #{quantization_layer_forward.1} parent=0 // pred_check_branch
    %18 = sbr.rel (0) target = $region17
  $region16: #{quantization_layer_forward.1} parent=0 // pred_region
    _
  $region17: #{quantization_layer_forward.1} parent=0 // pred_fallthru
    _
  %v20 = vld [vmem:[%s0] sm:$0xff]
  %v21 = vld [vmem:[%s0 + $0x8] sm:$0xff]
  %v22 = vld [vmem:[%s0 + $0x10] sm:$0xff]
  %v23 = vld [vmem:[%s0 + $0x18] sm:$0xff]
  %v24 = vld [vmem:[%s0 + $0x20] sm:$0xff]
  %v25 = vld [vmem:[%s0 + $0x28] sm:$0xff]
  %v26 = vld [vmem:[%s0 + $0x30] sm:$0xff]
  %v27 = vld [vmem:[%s0 + $0x38] sm:$0xff]
  %v28 = vld [vmem:[%s0 + $0x40] sm:$0xff]
  %v29 = vld [vmem:[%s0 + $0x48] sm:$0xff]
  %v30 = vld [vmem:[%s0 + $0x50] sm:$0xff]
  %v31 = vld [vmem:[%s0 + $0x58] sm:$0xff]
  %v32 = vld [vmem:[%s0 + $0x60] sm:$0xff]
  %v33 = vld [vmem:[%s0 + $0x68] sm:$0xff]
  %v34 = vld [vmem:[%s0 + $0x70] sm:$0xff]
  %v35 = vld [vmem:[%s0 + $0x78] sm:$0xff]
  %v36 = vld [vmem:[%s1] sm:$0xf]
  %v37 = vld [vmem:[%s1 + $0x4] sm:$0xf]
  %v38 = vld [vmem:[%s1 + $0x8] sm:$0xf]
  %v39 = vld [vmem:[%s1 + $0xc] sm:$0xf]
  %v40 = vld [vmem:[%s2] sm:$0xff]
  %v41 = vld [vmem:[%s2 + $0x8] sm:$0xff]
  %v42 = vld [vmem:[%s2 + $0x10] sm:$0xff]
  %v43 = vld [vmem:[%s2 + $0x18] sm:$0xff]
  %v44 = vld [vmem:[%s2 + $0x20] sm:$0xff]
  %v45 = vld [vmem:[%s2 + $0x28] sm:$0xff]
  %v46 = vld [vmem:[%s2 + $0x30] sm:$0xff]
  %v47 = vld [vmem:[%s2 + $0x38] sm:$0xff]
  %v48 = vld [vmem:[%s2 + $0x40] sm:$0xff]
  %v49 = vld [vmem:[%s2 + $0x48] sm:$0xff]
  %v50 = vld [vmem:[%s2 + $0x50] sm:$0xff]
  %v51 = vld [vmem:[%s2 + $0x58] sm:$0xff]
  %v52 = vld [vmem:[%s2 + $0x60] sm:$0xff]
  %v53 = vld [vmem:[%s2 + $0x68] sm:$0xff]
  %v54 = vld [vmem:[%s2 + $0x70] sm:$0xff]
  %v55 = vld [vmem:[%s2 + $0x78] sm:$0xff]
  %v56 = vld [vmem:[%s3] sm:$0x1]
  %v57 = vpack.c.bf16 %v21, %v20
  %v58 = vpack.c.bf16 %v23, %v22
  %v59 = vpack.c.bf16 %v25, %v24
  %v60 = vpack.c.bf16 %v27, %v26
  %v61 = vpack.c.bf16 %v29, %v28
  %v62 = vpack.c.bf16 %v31, %v30
  %v63 = vpack.c.bf16 %v33, %v32
  %v64 = vpack.c.bf16 %v35, %v34
  %v69 = vunpack.c.l.b16 %v36
  %v70 = vunpack.c.l.b16 %v37
  %v71 = vunpack.c.l.b16 %v38
  %v72 = vunpack.c.l.b16 %v39
  %v73 = vpack.c.b16 %v70, %v69
  %v74 = vpack.c.b16 %v72, %v71
  %vm77 = vcmask 261120
  %v79 = vsel %vm77, %v57, 0
  %v82 = vsel %vm77, %v58, 0
  %v85 = vsel %vm77, %v59, 0
  %v88 = vsel %vm77, %v60, 0
  %v91 = vsel %vm77, %v61, 0
  %v94 = vsel %vm77, %v62, 0
  %v97 = vsel %vm77, %v63, 0
  %v100 = vsel %vm77, %v64, 0
  %102 = vmatpush.bf16.msra.mxu0 0
  %103 = vmatpush.bf16.msra.mxu0 0
  %104 = vmatpush.bf16.msra.mxu0 0
  %105 = vmatpush.bf16.msra.mxu0 0
  %106 = vmatpush.bf16.msra.mxu0 0
  %107 = vmatpush.bf16.msra.mxu0 0
  %108 = vmatpush.bf16.msra.mxu0 %v74
  %109 = vmatpush.bf16.msra.mxu0 %v73
  %110 = vmatmul.bf16.gmra.mxu0 %v79
  %v111 = vpop.f32.mrf.mxu0
  %v112 = vadd.f32 0.0, %v111
  %v113 = vpop.f32.mrf.mxu0
  %v114 = vadd.f32 0.0, %v113
  %115 = vmatmul.bf16.gmra.mxu0 %v82
  %v116 = vpop.f32.mrf.mxu0
  %v117 = vadd.f32 0.0, %v116
  %v118 = vpop.f32.mrf.mxu0
  %v119 = vadd.f32 0.0, %v118
  %120 = vmatmul.bf16.gmra.mxu0 %v85
  %v121 = vpop.f32.mrf.mxu0
  %v122 = vadd.f32 0.0, %v121
  %v123 = vpop.f32.mrf.mxu0
  %v124 = vadd.f32 0.0, %v123
  %125 = vmatmul.bf16.gmra.mxu0 %v88
  %v126 = vpop.f32.mrf.mxu0
  %v127 = vadd.f32 0.0, %v126
  %v128 = vpop.f32.mrf.mxu0
  %v129 = vadd.f32 0.0, %v128
  %130 = vmatmul.bf16.gmra.mxu0 %v91
  %v131 = vpop.f32.mrf.mxu0
  %v132 = vadd.f32 0.0, %v131
  %v133 = vpop.f32.mrf.mxu0
  %v134 = vadd.f32 0.0, %v133
  %135 = vmatmul.bf16.gmra.mxu0 %v94
  %v136 = vpop.f32.mrf.mxu0
  %v137 = vadd.f32 0.0, %v136
  %v138 = vpop.f32.mrf.mxu0
  %v139 = vadd.f32 0.0, %v138
  %140 = vmatmul.bf16.gmra.mxu0 %v97
  %v141 = vpop.f32.mrf.mxu0
  %v142 = vadd.f32 0.0, %v141
  %v143 = vpop.f32.mrf.mxu0
  %v144 = vadd.f32 0.0, %v143
  %145 = vmatmul.bf16.gmra.mxu0 %v100
  %v146 = vpop.f32.mrf.mxu0
  %v147 = vadd.f32 0.0, %v146
  %v148 = vpop.f32.mrf.mxu0
  %v149 = vadd.f32 0.0, %v148
  %150 = vdwg.mxu0
  %v152 = vperm.slane %v56, 0
  %v154 = vsub.f32 %v152, %v112
  %v155 = vsub.f32 %v152, %v114
  %v156 = vsub.f32 %v152, %v117
  %v157 = vsub.f32 %v152, %v119
  %v158 = vsub.f32 %v152, %v122
  %v159 = vsub.f32 %v152, %v124
  %v160 = vsub.f32 %v152, %v127
  %v161 = vsub.f32 %v152, %v129
  %v162 = vsub.f32 %v152, %v132
  %v163 = vsub.f32 %v152, %v134
  %v164 = vsub.f32 %v152, %v137
  %v165 = vsub.f32 %v152, %v139
  %v166 = vsub.f32 %v152, %v142
  %v167 = vsub.f32 %v152, %v144
  %v168 = vsub.f32 %v152, %v147
  %v169 = vsub.f32 %v152, %v149
  %170 = vmin.xlane.f32.xlu0 %v154
  %v171 = vpop.xlane.xlu0 %170
  %172 = vmin.xlane.f32.xlu0 %v155
  %v173 = vpop.xlane.xlu0 %172
  %174 = vmin.xlane.f32.xlu0 %v156
  %v175 = vpop.xlane.xlu0 %174
  %176 = vmin.xlane.f32.xlu0 %v157
  %v177 = vpop.xlane.xlu0 %176
  %178 = vmin.xlane.f32.xlu0 %v158
  %v179 = vpop.xlane.xlu0 %178
  %180 = vmin.xlane.f32.xlu0 %v159
  %v181 = vpop.xlane.xlu0 %180
  %182 = vmin.xlane.f32.xlu0 %v160
  %v183 = vpop.xlane.xlu0 %182
  %184 = vmin.xlane.f32.xlu0 %v161
  %v185 = vpop.xlane.xlu0 %184
  %186 = vmin.xlane.f32.xlu0 %v162
  %v187 = vpop.xlane.xlu0 %186
  %188 = vmin.xlane.f32.xlu0 %v163
  %v189 = vpop.xlane.xlu0 %188
  %190 = vmin.xlane.f32.xlu0 %v164
  %v191 = vpop.xlane.xlu0 %190
  %192 = vmin.xlane.f32.xlu0 %v165
  %v193 = vpop.xlane.xlu0 %192
  %194 = vmin.xlane.f32.xlu0 %v166
  %v195 = vpop.xlane.xlu0 %194
  %196 = vmin.xlane.f32.xlu0 %v167
  %v197 = vpop.xlane.xlu0 %196
  %198 = vmin.xlane.f32.xlu0 %v168
  %v199 = vpop.xlane.xlu0 %198
  %200 = vmin.xlane.f32.xlu0 %v169
  %v201 = vpop.xlane.xlu0 %200
  %v202 = vlaneseq
  %v203 = vand.u32 %v202, 127
  %vm204 = vcmp.eq.f32.partialorder %v154, %v171
  %vm205 = vcmp.eq.f32.partialorder %v155, %v173
  %vm206 = vcmp.eq.f32.partialorder %v156, %v175
  %vm207 = vcmp.eq.f32.partialorder %v157, %v177
  %vm208 = vcmp.eq.f32.partialorder %v158, %v179
  %vm209 = vcmp.eq.f32.partialorder %v159, %v181
  %vm210 = vcmp.eq.f32.partialorder %v160, %v183
  %vm211 = vcmp.eq.f32.partialorder %v161, %v185
  %vm212 = vcmp.eq.f32.partialorder %v162, %v187
  %vm213 = vcmp.eq.f32.partialorder %v163, %v189
  %vm214 = vcmp.eq.f32.partialorder %v164, %v191
  %vm215 = vcmp.eq.f32.partialorder %v165, %v193
  %vm216 = vcmp.eq.f32.partialorder %v166, %v195
  %vm217 = vcmp.eq.f32.partialorder %v167, %v197
  %vm218 = vcmp.eq.f32.partialorder %v168, %v199
  %vm219 = vcmp.eq.f32.partialorder %v169, %v201
  %v220 = vsel %vm204, %v203, 128
  %v221 = vsel %vm205, %v203, 128
  %v222 = vsel %vm206, %v203, 128
  %v223 = vsel %vm207, %v203, 128
  %v224 = vsel %vm208, %v203, 128
  %v225 = vsel %vm209, %v203, 128
  %v226 = vsel %vm210, %v203, 128
  %v227 = vsel %vm211, %v203, 128
  %v228 = vsel %vm212, %v203, 128
  %v229 = vsel %vm213, %v203, 128
  %v230 = vsel %vm214, %v203, 128
  %v231 = vsel %vm215, %v203, 128
  %v232 = vsel %vm216, %v203, 128
  %v233 = vsel %vm217, %v203, 128
  %v234 = vsel %vm218, %v203, 128
  %v235 = vsel %vm219, %v203, 128
  %v236 = vand.u32 %v220, 65535
  %v237 = vshra.s32 %v220, 16
  %v238 = vcvt.s32.f32 %v236
  %v239 = vcvt.s32.f32 %v237
  %240 = vmin.xlane.f32.xlu0 %v239
  %v241 = vpop.xlane.xlu0 %240
  %vm242 = vcmp.eq.f32.partialorder %v239, %v241
  %v243 = vsel %vm242, %v238, inf
  %244 = vmin.xlane.f32.xlu0 %v243
  %v245 = vpop.xlane.xlu0 %244
  %v246 = vcvt.f32.s32 %v245
  %v247 = vcvt.f32.s32 %v241
  %v248 = vshll.u32 %v247, 16
  %v249 = vadd.s32 %v248, %v246
  %v250 = vand.u32 %v221, 65535
  %v251 = vshra.s32 %v221, 16
  %v252 = vcvt.s32.f32 %v250
  %v253 = vcvt.s32.f32 %v251
  %254 = vmin.xlane.f32.xlu0 %v253
  %v255 = vpop.xlane.xlu0 %254
  %vm256 = vcmp.eq.f32.partialorder %v253, %v255
  %v257 = vsel %vm256, %v252, inf
  %258 = vmin.xlane.f32.xlu0 %v257
  %v259 = vpop.xlane.xlu0 %258
  %v260 = vcvt.f32.s32 %v259
  %v261 = vcvt.f32.s32 %v255
  %v262 = vshll.u32 %v261, 16
  %v263 = vadd.s32 %v262, %v260
  %v264 = vand.u32 %v222, 65535
  %v265 = vshra.s32 %v222, 16
  %v266 = vcvt.s32.f32 %v264
  %v267 = vcvt.s32.f32 %v265
  %268 = vmin.xlane.f32.xlu0 %v267
  %v269 = vpop.xlane.xlu0 %268
  %vm270 = vcmp.eq.f32.partialorder %v267, %v269
  %v271 = vsel %vm270, %v266, inf
  %272 = vmin.xlane.f32.xlu0 %v271
  %v273 = vpop.xlane.xlu0 %272
  %v274 = vcvt.f32.s32 %v273
  %v275 = vcvt.f32.s32 %v269
  %v276 = vshll.u32 %v275, 16
  %v277 = vadd.s32 %v276, %v274
  %v278 = vand.u32 %v223, 65535
  %v279 = vshra.s32 %v223, 16
  %v280 = vcvt.s32.f32 %v278
  %v281 = vcvt.s32.f32 %v279
  %282 = vmin.xlane.f32.xlu0 %v281
  %v283 = vpop.xlane.xlu0 %282
  %vm284 = vcmp.eq.f32.partialorder %v281, %v283
  %v285 = vsel %vm284, %v280, inf
  %286 = vmin.xlane.f32.xlu0 %v285
  %v287 = vpop.xlane.xlu0 %286
  %v288 = vcvt.f32.s32 %v287
  %v289 = vcvt.f32.s32 %v283
  %v290 = vshll.u32 %v289, 16
  %v291 = vadd.s32 %v290, %v288
  %v292 = vand.u32 %v224, 65535
  %v293 = vshra.s32 %v224, 16
  %v294 = vcvt.s32.f32 %v292
  %v295 = vcvt.s32.f32 %v293
  %296 = vmin.xlane.f32.xlu0 %v295
  %v297 = vpop.xlane.xlu0 %296
  %vm298 = vcmp.eq.f32.partialorder %v295, %v297
  %v299 = vsel %vm298, %v294, inf
  %300 = vmin.xlane.f32.xlu0 %v299
  %v301 = vpop.xlane.xlu0 %300
  %v302 = vcvt.f32.s32 %v301
  %v303 = vcvt.f32.s32 %v297
  %v304 = vshll.u32 %v303, 16
  %v305 = vadd.s32 %v304, %v302
  %v306 = vand.u32 %v225, 65535
  %v307 = vshra.s32 %v225, 16
  %v308 = vcvt.s32.f32 %v306
  %v309 = vcvt.s32.f32 %v307
  %310 = vmin.xlane.f32.xlu0 %v309
  %v311 = vpop.xlane.xlu0 %310
  %vm312 = vcmp.eq.f32.partialorder %v309, %v311
  %v313 = vsel %vm312, %v308, inf
  %314 = vmin.xlane.f32.xlu0 %v313
  %v315 = vpop.xlane.xlu0 %314
  %v316 = vcvt.f32.s32 %v315
  %v317 = vcvt.f32.s32 %v311
  %v318 = vshll.u32 %v317, 16
  %v319 = vadd.s32 %v318, %v316
  %v320 = vand.u32 %v226, 65535
  %v321 = vshra.s32 %v226, 16
  %v322 = vcvt.s32.f32 %v320
  %v323 = vcvt.s32.f32 %v321
  %324 = vmin.xlane.f32.xlu0 %v323
  %v325 = vpop.xlane.xlu0 %324
  %vm326 = vcmp.eq.f32.partialorder %v323, %v325
  %v327 = vsel %vm326, %v322, inf
  %328 = vmin.xlane.f32.xlu0 %v327
  %v329 = vpop.xlane.xlu0 %328
  %v330 = vcvt.f32.s32 %v329
  %v331 = vcvt.f32.s32 %v325
  %v332 = vshll.u32 %v331, 16
  %v333 = vadd.s32 %v332, %v330
  %v334 = vand.u32 %v227, 65535
  %v335 = vshra.s32 %v227, 16
  %v336 = vcvt.s32.f32 %v334
  %v337 = vcvt.s32.f32 %v335
  %338 = vmin.xlane.f32.xlu0 %v337
  %v339 = vpop.xlane.xlu0 %338
  %vm340 = vcmp.eq.f32.partialorder %v337, %v339
  %v341 = vsel %vm340, %v336, inf
  %342 = vmin.xlane.f32.xlu0 %v341
  %v343 = vpop.xlane.xlu0 %342
  %v344 = vcvt.f32.s32 %v343
  %v345 = vcvt.f32.s32 %v339
  %v346 = vshll.u32 %v345, 16
  %v347 = vadd.s32 %v346, %v344
  %v348 = vand.u32 %v228, 65535
  %v349 = vshra.s32 %v228, 16
  %v350 = vcvt.s32.f32 %v348
  %v351 = vcvt.s32.f32 %v349
  %352 = vmin.xlane.f32.xlu0 %v351
  %v353 = vpop.xlane.xlu0 %352
  %vm354 = vcmp.eq.f32.partialorder %v351, %v353
  %v355 = vsel %vm354, %v350, inf
  %356 = vmin.xlane.f32.xlu0 %v355
  %v357 = vpop.xlane.xlu0 %356
  %v358 = vcvt.f32.s32 %v357
  %v359 = vcvt.f32.s32 %v353
  %v360 = vshll.u32 %v359, 16
  %v361 = vadd.s32 %v360, %v358
  %v362 = vand.u32 %v229, 65535
  %v363 = vshra.s32 %v229, 16
  %v364 = vcvt.s32.f32 %v362
  %v365 = vcvt.s32.f32 %v363
  %366 = vmin.xlane.f32.xlu0 %v365
  %v367 = vpop.xlane.xlu0 %366
  %vm368 = vcmp.eq.f32.partialorder %v365, %v367
  %v369 = vsel %vm368, %v364, inf
  %370 = vmin.xlane.f32.xlu0 %v369
  %v371 = vpop.xlane.xlu0 %370
  %v372 = vcvt.f32.s32 %v371
  %v373 = vcvt.f32.s32 %v367
  %v374 = vshll.u32 %v373, 16
  %v375 = vadd.s32 %v374, %v372
  %v376 = vand.u32 %v230, 65535
  %v377 = vshra.s32 %v230, 16
  %v378 = vcvt.s32.f32 %v376
  %v379 = vcvt.s32.f32 %v377
  %380 = vmin.xlane.f32.xlu0 %v379
  %v381 = vpop.xlane.xlu0 %380
  %vm382 = vcmp.eq.f32.partialorder %v379, %v381
  %v383 = vsel %vm382, %v378, inf
  %384 = vmin.xlane.f32.xlu0 %v383
  %v385 = vpop.xlane.xlu0 %384
  %v386 = vcvt.f32.s32 %v385
  %v387 = vcvt.f32.s32 %v381
  %v388 = vshll.u32 %v387, 16
  %v389 = vadd.s32 %v388, %v386
  %v390 = vand.u32 %v231, 65535
  %v391 = vshra.s32 %v231, 16
  %v392 = vcvt.s32.f32 %v390
  %v393 = vcvt.s32.f32 %v391
  %394 = vmin.xlane.f32.xlu0 %v393
  %v395 = vpop.xlane.xlu0 %394
  %vm396 = vcmp.eq.f32.partialorder %v393, %v395
  %v397 = vsel %vm396, %v392, inf
  %398 = vmin.xlane.f32.xlu0 %v397
  %v399 = vpop.xlane.xlu0 %398
  %v400 = vcvt.f32.s32 %v399
  %v401 = vcvt.f32.s32 %v395
  %v402 = vshll.u32 %v401, 16
  %v403 = vadd.s32 %v402, %v400
  %v404 = vand.u32 %v232, 65535
  %v405 = vshra.s32 %v232, 16
  %v406 = vcvt.s32.f32 %v404
  %v407 = vcvt.s32.f32 %v405
  %408 = vmin.xlane.f32.xlu0 %v407
  %v409 = vpop.xlane.xlu0 %408
  %vm410 = vcmp.eq.f32.partialorder %v407, %v409
  %v411 = vsel %vm410, %v406, inf
  %412 = vmin.xlane.f32.xlu0 %v411
  %v413 = vpop.xlane.xlu0 %412
  %v414 = vcvt.f32.s32 %v413
  %v415 = vcvt.f32.s32 %v409
  %v416 = vshll.u32 %v415, 16
  %v417 = vadd.s32 %v416, %v414
  %v418 = vand.u32 %v233, 65535
  %v419 = vshra.s32 %v233, 16
  %v420 = vcvt.s32.f32 %v418
  %v421 = vcvt.s32.f32 %v419
  %422 = vmin.xlane.f32.xlu0 %v421
  %v423 = vpop.xlane.xlu0 %422
  %vm424 = vcmp.eq.f32.partialorder %v421, %v423
  %v425 = vsel %vm424, %v420, inf
  %426 = vmin.xlane.f32.xlu0 %v425
  %v427 = vpop.xlane.xlu0 %426
  %v428 = vcvt.f32.s32 %v427
  %v429 = vcvt.f32.s32 %v423
  %v430 = vshll.u32 %v429, 16
  %v431 = vadd.s32 %v430, %v428
  %v432 = vand.u32 %v234, 65535
  %v433 = vshra.s32 %v234, 16
  %v434 = vcvt.s32.f32 %v432
  %v435 = vcvt.s32.f32 %v433
  %436 = vmin.xlane.f32.xlu0 %v435
  %v437 = vpop.xlane.xlu0 %436
  %vm438 = vcmp.eq.f32.partialorder %v435, %v437
  %v439 = vsel %vm438, %v434, inf
  %440 = vmin.xlane.f32.xlu0 %v439
  %v441 = vpop.xlane.xlu0 %440
  %v442 = vcvt.f32.s32 %v441
  %v443 = vcvt.f32.s32 %v437
  %v444 = vshll.u32 %v443, 16
  %v445 = vadd.s32 %v444, %v442
  %v446 = vand.u32 %v235, 65535
  %v447 = vshra.s32 %v235, 16
  %v448 = vcvt.s32.f32 %v446
  %v449 = vcvt.s32.f32 %v447
  %450 = vmin.xlane.f32.xlu0 %v449
  %v451 = vpop.xlane.xlu0 %450
  %vm452 = vcmp.eq.f32.partialorder %v449, %v451
  %v453 = vsel %vm452, %v448, inf
  %454 = vmin.xlane.f32.xlu0 %v453
  %v455 = vpop.xlane.xlu0 %454
  %v456 = vcvt.f32.s32 %v455
  %v457 = vcvt.f32.s32 %v451
  %v458 = vshll.u32 %v457, 16
  %v459 = vadd.s32 %v458, %v456
  %vm460 = vcmp.eq.s32.totalorder %v203, %v249
  %vm461 = vcmp.eq.s32.totalorder %v203, %v263
  %vm462 = vcmp.eq.s32.totalorder %v203, %v277
  %vm463 = vcmp.eq.s32.totalorder %v203, %v291
  %vm464 = vcmp.eq.s32.totalorder %v203, %v305
  %vm465 = vcmp.eq.s32.totalorder %v203, %v319
  %vm466 = vcmp.eq.s32.totalorder %v203, %v333
  %vm467 = vcmp.eq.s32.totalorder %v203, %v347
  %vm468 = vcmp.eq.s32.totalorder %v203, %v361
  %vm469 = vcmp.eq.s32.totalorder %v203, %v375
  %vm470 = vcmp.eq.s32.totalorder %v203, %v389
  %vm471 = vcmp.eq.s32.totalorder %v203, %v403
  %vm472 = vcmp.eq.s32.totalorder %v203, %v417
  %vm473 = vcmp.eq.s32.totalorder %v203, %v431
  %vm474 = vcmp.eq.s32.totalorder %v203, %v445
  %vm475 = vcmp.eq.s32.totalorder %v203, %v459
  %v476 = vsel %vm460, 1, 0
  %v477 = vsel %vm461, 1, 0
  %v478 = vsel %vm462, 1, 0
  %v479 = vsel %vm463, 1, 0
  %v480 = vsel %vm464, 1, 0
  %v481 = vsel %vm465, 1, 0
  %v482 = vsel %vm466, 1, 0
  %v483 = vsel %vm467, 1, 0
  %v484 = vsel %vm468, 1, 0
  %v485 = vsel %vm469, 1, 0
  %v486 = vsel %vm470, 1, 0
  %v487 = vsel %vm471, 1, 0
  %v488 = vsel %vm472, 1, 0
  %v489 = vsel %vm473, 1, 0
  %v490 = vsel %vm474, 1, 0
  %v491 = vsel %vm475, 1, 0
  %v492 = vcvt.s32.f32 %v476
  %v493 = vcvt.s32.f32 %v477
  %v494 = vcvt.s32.f32 %v478
  %v495 = vcvt.s32.f32 %v479
  %v496 = vcvt.s32.f32 %v480
  %v497 = vcvt.s32.f32 %v481
  %v498 = vcvt.s32.f32 %v482
  %v499 = vcvt.s32.f32 %v483
  %v500 = vcvt.s32.f32 %v484
  %v501 = vcvt.s32.f32 %v485
  %v502 = vcvt.s32.f32 %v486
  %v503 = vcvt.s32.f32 %v487
  %v504 = vcvt.s32.f32 %v488
  %v505 = vcvt.s32.f32 %v489
  %v506 = vcvt.s32.f32 %v490
  %v507 = vcvt.s32.f32 %v491
  %508 = vmatpush.msra.mxu0 %v55
  %509 = vmatpush.msra.mxu0 %v54
  %510 = vmatpush.msra.mxu0 %v53
  %511 = vmatpush.msra.mxu0 %v52
  %512 = vmatpush.msra.mxu0 %v51
  %513 = vmatpush.msra.mxu0 %v50
  %514 = vmatpush.msra.mxu0 %v49
  %515 = vmatpush.msra.mxu0 %v48
  %516 = vmatpush.msra.mxu0 %v47
  %517 = vmatpush.msra.mxu0 %v46
  %518 = vmatpush.msra.mxu0 %v45
  %519 = vmatpush.msra.mxu0 %v44
  %520 = vmatpush.msra.mxu0 %v43
  %521 = vmatpush.msra.mxu0 %v42
  %522 = vmatpush.msra.mxu0 %v41
  %523 = vmatpush.msra.mxu0 %v40
  %524 = vmatmul.f32.gmra.mxu0 %v492
  %v525 = vpop.f32.mrf.mxu0
  %v526 = vadd.f32 0.0, %v525
  %527 = vmatmul.f32.gmra.mxu0 %v493
  %v528 = vpop.f32.mrf.mxu0
  %v529 = vadd.f32 0.0, %v528
  %530 = vmatmul.f32.gmra.mxu0 %v494
  %v531 = vpop.f32.mrf.mxu0
  %v532 = vadd.f32 0.0, %v531
  %533 = vmatmul.f32.gmra.mxu0 %v495
  %v534 = vpop.f32.mrf.mxu0
  %v535 = vadd.f32 0.0, %v534
  %536 = vmatmul.f32.gmra.mxu0 %v496
  %v537 = vpop.f32.mrf.mxu0
  %v538 = vadd.f32 0.0, %v537
  %539 = vmatmul.f32.gmra.mxu0 %v497
  %v540 = vpop.f32.mrf.mxu0
  %v541 = vadd.f32 0.0, %v540
  %542 = vmatmul.f32.gmra.mxu0 %v498
  %v543 = vpop.f32.mrf.mxu0
  %v544 = vadd.f32 0.0, %v543
  %545 = vmatmul.f32.gmra.mxu0 %v499
  %v546 = vpop.f32.mrf.mxu0
  %v547 = vadd.f32 0.0, %v546
  %548 = vmatmul.f32.gmra.mxu0 %v500
  %v549 = vpop.f32.mrf.mxu0
  %v550 = vadd.f32 0.0, %v549
  %551 = vmatmul.f32.gmra.mxu0 %v501
  %v552 = vpop.f32.mrf.mxu0
  %v553 = vadd.f32 0.0, %v552
  %554 = vmatmul.f32.gmra.mxu0 %v502
  %v555 = vpop.f32.mrf.mxu0
  %v556 = vadd.f32 0.0, %v555
  %557 = vmatmul.f32.gmra.mxu0 %v503
  %v558 = vpop.f32.mrf.mxu0
  %v559 = vadd.f32 0.0, %v558
  %560 = vmatmul.f32.gmra.mxu0 %v504
  %v561 = vpop.f32.mrf.mxu0
  %v562 = vadd.f32 0.0, %v561
  %563 = vmatmul.f32.gmra.mxu0 %v505
  %v564 = vpop.f32.mrf.mxu0
  %v565 = vadd.f32 0.0, %v564
  %566 = vmatmul.f32.gmra.mxu0 %v506
  %v567 = vpop.f32.mrf.mxu0
  %v568 = vadd.f32 0.0, %v567
  %569 = vmatmul.f32.gmra.mxu0 %v507
  %v570 = vpop.f32.mrf.mxu0
  %v571 = vadd.f32 0.0, %v570
  %572 = vdwg.mxu0
  %v573 = vsub.f32 %v526, %v20
  %v574 = vsub.f32 %v529, %v21
  %v575 = vsub.f32 %v532, %v22
  %v576 = vsub.f32 %v535, %v23
  %v577 = vsub.f32 %v538, %v24
  %v578 = vsub.f32 %v541, %v25
  %v579 = vsub.f32 %v544, %v26
  %v580 = vsub.f32 %v547, %v27
  %v581 = vsub.f32 %v550, %v28
  %v582 = vsub.f32 %v553, %v29
  %v583 = vsub.f32 %v556, %v30
  %v584 = vsub.f32 %v559, %v31
  %v585 = vsub.f32 %v562, %v32
  %v586 = vsub.f32 %v565, %v33
  %v587 = vsub.f32 %v568, %v34
  %v588 = vsub.f32 %v571, %v35
  %v589 = vmul.f32 %v573, %v573
  %v590 = vmul.f32 %v574, %v574
  %v591 = vmul.f32 %v575, %v575
  %v592 = vmul.f32 %v576, %v576
  %v593 = vmul.f32 %v577, %v577
  %v594 = vmul.f32 %v578, %v578
  %v595 = vmul.f32 %v579, %v579
  %v596 = vmul.f32 %v580, %v580
  %v597 = vmul.f32 %v581, %v581
  %v598 = vmul.f32 %v582, %v582
  %v599 = vmul.f32 %v583, %v583
  %v600 = vmul.f32 %v584, %v584
  %v601 = vmul.f32 %v585, %v585
  %v602 = vmul.f32 %v586, %v586
  %v603 = vmul.f32 %v587, %v587
  %v604 = vmul.f32 %v588, %v588
  %v605 = vsel %vm77, %v589, 0.0
  %v606 = vsel %vm77, %v590, 0.0
  %v607 = vadd.f32 %v605, %v606
  %v608 = vsel %vm77, %v591, 0.0
  %v609 = vadd.f32 %v607, %v608
  %v610 = vsel %vm77, %v592, 0.0
  %v611 = vadd.f32 %v609, %v610
  %v612 = vsel %vm77, %v593, 0.0
  %v613 = vadd.f32 %v611, %v612
  %v614 = vsel %vm77, %v594, 0.0
  %v615 = vadd.f32 %v613, %v614
  %v616 = vsel %vm77, %v595, 0.0
  %v617 = vadd.f32 %v615, %v616
  %v618 = vsel %vm77, %v596, 0.0
  %v619 = vadd.f32 %v617, %v618
  %v620 = vsel %vm77, %v597, 0.0
  %v621 = vadd.f32 %v619, %v620
  %v622 = vsel %vm77, %v598, 0.0
  %v623 = vadd.f32 %v621, %v622
  %v624 = vsel %vm77, %v599, 0.0
  %v625 = vadd.f32 %v623, %v624
  %v626 = vsel %vm77, %v600, 0.0
  %v627 = vadd.f32 %v625, %v626
  %v628 = vsel %vm77, %v601, 0.0
  %v629 = vadd.f32 %v627, %v628
  %v630 = vsel %vm77, %v602, 0.0
  %v631 = vadd.f32 %v629, %v630
  %v632 = vsel %vm77, %v603, 0.0
  %v633 = vadd.f32 %v631, %v632
  %v634 = vsel %vm77, %v604, 0.0
  %v635 = vadd.f32 %v633, %v634
  %v636 = vrot.slane %v635, 4
  %v637 = vadd.f32 %v635, %v636
  %v638 = vrot.slane %v637, 2
  %v639 = vadd.f32 %v637, %v638
  %v640 = vrot.slane %v639, 1
  %v641 = vadd.f32 %v639, %v640
  %vm642 = vcmask 253952
  %643 = vst.msk [vmem:[%s5] sm:$0x1] %vm642, %v641
  %v644 = vadd.f32 %v573, %v20
  %v645 = vadd.f32 %v574, %v21
  %v646 = vadd.f32 %v575, %v22
  %v647 = vadd.f32 %v576, %v23
  %v648 = vadd.f32 %v577, %v24
  %v649 = vadd.f32 %v578, %v25
  %v650 = vadd.f32 %v579, %v26
  %v651 = vadd.f32 %v580, %v27
  %v652 = vadd.f32 %v581, %v28
  %v653 = vadd.f32 %v582, %v29
  %v654 = vadd.f32 %v583, %v30
  %v655 = vadd.f32 %v584, %v31
  %v656 = vadd.f32 %v585, %v32
  %v657 = vadd.f32 %v586, %v33
  %v658 = vadd.f32 %v587, %v34
  %v659 = vadd.f32 %v588, %v35
  %660 = vst.msk [vmem:[%s4] sm:$0xff] %vm77, %v644
  %661 = vst.msk [vmem:[%s4 + $0x8] sm:$0xff] %vm77, %v645
  %662 = vst.msk [vmem:[%s4 + $0x10] sm:$0xff] %vm77, %v646
  %663 = vst.msk [vmem:[%s4 + $0x18] sm:$0xff] %vm77, %v647
  %664 = vst.msk [vmem:[%s4 + $0x20] sm:$0xff] %vm77, %v648
  %665 = vst.msk [vmem:[%s4 + $0x28] sm:$0xff] %vm77, %v649
  %666 = vst.msk [vmem:[%s4 + $0x30] sm:$0xff] %vm77, %v650
  %667 = vst.msk [vmem:[%s4 + $0x38] sm:$0xff] %vm77, %v651
  %668 = vst.msk [vmem:[%s4 + $0x40] sm:$0xff] %vm77, %v652
  %669 = vst.msk [vmem:[%s4 + $0x48] sm:$0xff] %vm77, %v653
  %670 = vst.msk [vmem:[%s4 + $0x50] sm:$0xff] %vm77, %v654
  %671 = vst.msk [vmem:[%s4 + $0x58] sm:$0xff] %vm77, %v655
  %672 = vst.msk [vmem:[%s4 + $0x60] sm:$0xff] %vm77, %v656
  %673 = vst.msk [vmem:[%s4 + $0x68] sm:$0xff] %vm77, %v657
  %674 = vst.msk [vmem:[%s4 + $0x70] sm:$0xff] %vm77, %v658
  %675 = vst.msk [vmem:[%s4 + $0x78] sm:$0xff] %vm77, %v659
  // Predicated region
  $region18: #{quantization_layer_forward.1} parent=0 // pred_check
    _
  $region19: #{quantization_layer_forward.1} parent=0 // pred_check_branch
    %677 = sbr.rel (0) target = $region21
  $region20: #{quantization_layer_forward.1} parent=0 // pred_region
    _
  $region21: #{quantization_layer_forward.1} parent=0 // pred_fallthru
    _
  // Predicated region
  $region22: #{quantization_layer_forward.1} parent=0 // pred_check
    _
  $region23: #{quantization_layer_forward.1} parent=0 // pred_check_branch
    %679 = sbr.rel (0) target = $region25
  $region24: #{quantization_layer_forward.1} parent=0 // pred_region
    _
  $region25: #{quantization_layer_forward.1} parent=0 // pred_fallthru
    _
  // Predicated region
  $region26: #{quantization_layer_forward.1} parent=0 // pred_check
    _
  $region27: #{quantization_layer_forward.1} parent=0 // pred_check_branch
    %681 = sbr.rel (0) target = $region29
  $region28: #{quantization_layer_forward.1} parent=0 // pred_region
    _
  $region29: #{quantization_layer_forward.1} parent=0 // pred_fallthru
    _
  // Predicated region
  $region30: #{quantization_layer_forward.1} parent=0 // pred_check
    _
  $region31: #{quantization_layer_forward.1} parent=0 // pred_check_branch
    %683 = sbr.rel (0) target = $region33
  $region32: #{quantization_layer_forward.1} parent=0 // pred_region
    _
  $region33: #{quantization_layer_forward.1} parent=0 // pred_fallthru
    _

</llo_original>
